<compile_context>
chip_gen: v7x
topology: tpu7x:2x2x1
jax: 0.10.0
libtpu: 0.0.40
codegen_flags: <defaults>
</compile_context>

<pallas_src>
import jax
import jax.numpy as jnp
from jax.experimental import pallas as pl
from jax.experimental.pallas import tpu as pltpu


def _conv1x1_fma_kernel(x_ref, wb_ref, o_ref):
    # x_ref:  (N, 1, M)      whole padded batch, flattened per-image spatial on lanes
    # wb_ref: (C_out, 2)     column 0 = conv weight, column 1 = bias - 7 (resident)
    # o_ref:  (N, C_out, M)
    w = wb_ref[:, 0:1]       # (C_out, 1)
    b = wb_ref[:, 1:2]       # (C_out, 1)  -- the "-7" is already folded in
    # (N,1,M) * (1,C_out,1) + (1,C_out,1) -> (N,C_out,M): single VPU broadcast-FMA.
    o_ref[...] = x_ref[...] * w[None] + b[None]


@jax.jit
def conv1x1_pad1_sub7(x_nchw, weight, bias):
    """Equivalent of Conv2d(1, 8, 1, stride=1, padding=1)(x) - 7."""
    n, c_in, h, w = x_nchw.shape
    assert c_in == 1, "kernel specialized for C_in == 1"
    c_out = weight.shape[0]

    hp, wp = h + 2, w + 2
    m = hp * wp  # flattened per-image padded spatial size (lane axis, full-extent block)

    # Glue: zero-pad spatial dims (padding=1 on a 1x1 conv) and flatten per image.
    # pad + reshape fuse into a single XLA pass; the reshape is layout-free.
    x_pad = jnp.pad(x_nchw, ((0, 0), (0, 0), (1, 1), (1, 1)))
    x_flat = x_pad.reshape(n, 1, m).astype(jnp.float32)

    # Fused parameter block: one resident (C_out, 2) VMEM input instead of two.
    wb = jnp.stack(
        [weight.reshape(c_out), bias.reshape(c_out) - 7.0], axis=1
    ).astype(jnp.float32)

    out_flat = pl.pallas_call(
        _conv1x1_fma_kernel,
        out_shape=jax.ShapeDtypeStruct((n, c_out, m), jnp.float32),
        grid=(1,),  # single step: whole batch in one full-extent block
        in_specs=[
            pl.BlockSpec((n, 1, m), lambda i: (0, 0, 0)),     # entire padded batch
            pl.BlockSpec((c_out, 2), lambda i: (0, 0)),       # fused weight / bias-7
        ],
        out_specs=pl.BlockSpec((n, c_out, m), lambda i: (0, 0, 0)),
        compiler_params=pltpu.CompilerParams(
            dimension_semantics=("arbitrary",),
        ),
    )(x_flat, wb)

    # Free row-major reshape back to NCHW; no transpose, no slice.
    return out_flat.reshape(n, c_out, hp, wp)


def reference(x_nchw, weight, bias):
    """Pure-JAX reference of the same computation."""
    x_pad = jnp.pad(x_nchw, ((0, 0), (0, 0), (1, 1), (1, 1)))
    out = x_pad[:, 0:1] * weight.reshape(1, -1, 1, 1) + bias.reshape(1, -1, 1, 1)
    return out - 7.0


if __name__ == "__main__":
    key = jax.random.PRNGKey(0)
    kx, kw, kb = jax.random.split(key, 3)

    # Small shapes consistent with the module: N=2, C_in=1, H=W=16.
    x = jax.random.normal(kx, (2, 1, 16, 16), dtype=jnp.float32)

    # Deterministic parameter init (Conv2d(1, 8, 1): weight (8,1,1,1), bias (8,)).
    c_out, c_in, kh, kw_ = 8, 1, 1, 1
    fan_in = c_in * kh * kw_
    bound = 1.0 / jnp.sqrt(fan_in)
    weight = jax.random.uniform(kw, (c_out, c_in, kh, kw_),
                                minval=-bound, maxval=bound, dtype=jnp.float32)
    bias = jax.random.uniform(kb, (c_out,),
                              minval=-bound, maxval=bound, dtype=jnp.float32)

    out = conv1x1_pad1_sub7(x, weight, bias)
    out = jax.block_until_ready(out)

    ref = reference(x, weight, bias)
    assert out.shape == (2, 8, 18, 18), out.shape
    assert jnp.allclose(out, ref, atol=1e-5, rtol=1e-5), "mismatch vs reference"

    print("KERNEL_OK")
</pallas_src>

<mosaic_0001>
module attributes {stable_mosaic.version = 11 : i64} {
  func.func @_conv1x1_fma_kernel(%arg0: i32, %arg1: memref<2x1x324xf32, #tpu.memory_space<vmem>>, %arg2: memref<8x2xf32, #tpu.memory_space<vmem>>, %arg3: memref<2x8x324xf32, #tpu.memory_space<vmem>>) attributes {dimension_semantics = [#tpu.dimension_semantics<arbitrary>], iteration_bounds = array<i64: 1>, scalar_prefetch = 0 : i64, scratch_operands = 0 : i64, tpu.core_type = #tpu.core_type<tc>, window_params = [{pipeline_mode = #tpu.pipeline_mode<synchronous>, transform_indices = @transform_0, window_bounds = array<i64: 2, 1, 324>}, {pipeline_mode = #tpu.pipeline_mode<synchronous>, transform_indices = @transform_1, window_bounds = array<i64: 8, 2>}, {pipeline_mode = #tpu.pipeline_mode<synchronous>, transform_indices = @transform_2, window_bounds = array<i64: 2, 8, 324>}]} {
    %c0 = arith.constant 0 : index
    %c0_0 = arith.constant 0 : index
    %0 = vector.load %arg2[%c0, %c0_0] : memref<8x2xf32, #tpu.memory_space<vmem>>, vector<8x1xf32>
    %c0_1 = arith.constant 0 : index
    %c1 = arith.constant 1 : index
    %1 = vector.load %arg2[%c0_1, %c1] : memref<8x2xf32, #tpu.memory_space<vmem>>, vector<8x1xf32>
    %c0_2 = arith.constant 0 : index
    %c0_3 = arith.constant 0 : index
    %c0_4 = arith.constant 0 : index
    %2 = vector.load %arg1[%c0_2, %c0_3, %c0_4] : memref<2x1x324xf32, #tpu.memory_space<vmem>>, vector<2x1x324xf32>
    %3 = vector.shape_cast %0 : vector<8x1xf32> to vector<1x8x1xf32>
    %4 = vector.broadcast %2 : vector<2x1x324xf32> to vector<2x8x324xf32>
    %5 = vector.broadcast %3 : vector<1x8x1xf32> to vector<2x8x324xf32>
    %6 = arith.mulf %4, %5 : vector<2x8x324xf32>
    %7 = vector.shape_cast %1 : vector<8x1xf32> to vector<1x8x1xf32>
    %8 = vector.broadcast %7 : vector<1x8x1xf32> to vector<2x8x324xf32>
    %9 = arith.addf %6, %8 : vector<2x8x324xf32>
    %c0_5 = arith.constant 0 : index
    %c0_6 = arith.constant 0 : index
    %c0_7 = arith.constant 0 : index
    %10 = vector.load %arg3[%c0_5, %c0_6, %c0_7] : memref<2x8x324xf32, #tpu.memory_space<vmem>>, vector<2x8x324xf32>
    tpu.vector_store %arg3[%c0_5, %c0_6, %c0_7], %9 {strides = array<i32>} : memref<2x8x324xf32, #tpu.memory_space<vmem>>, vector<2x8x324xf32>,
    return
  }
  func.func @transform_0(%arg0: i32) -> (i32, i32, i32) {
    %c0_i32 = arith.constant 0 : i32
    %c0_i32_0 = arith.constant 0 : i32
    %c0_i32_1 = arith.constant 0 : i32
    %c0_i32_2 = arith.constant 0 : i32
    return %c0_i32, %c0_i32_0, %c0_i32_1 : i32, i32, i32
  }
  func.func @transform_1(%arg0: i32) -> (i32, i32) {
    %c0_i32 = arith.constant 0 : i32
    %c0_i32_0 = arith.constant 0 : i32
    %c0_i32_1 = arith.constant 0 : i32
    return %c0_i32, %c0_i32_0 : i32, i32
  }
  func.func @transform_2(%arg0: i32) -> (i32, i32, i32) {
    %c0_i32 = arith.constant 0 : i32
    %c0_i32_0 = arith.constant 0 : i32
    %c0_i32_1 = arith.constant 0 : i32
    %c0_i32_2 = arith.constant 0 : i32
    return %c0_i32, %c0_i32_0, %c0_i32_1 : i32, i32, i32
  }
}

</mosaic_0001>

<llo_original>
// kernel: conv1x1_pad1_sub7.1
$region0: #{conv1x1_pad1_sub7.1}
  #allocation0 [shape = 'u32[]', space=smem, size = 0x4, offset = 0x4, fixed_abs, tag = 'smem constant byte address 0x4 - core index']
  #allocation1 [shape = 'u32[144,128]{1,0:T(1,128)}', space=vmem, size = 0x12000, scoped, tag = 'internal scratch']
  %s0 = inlined_call_operand.vmem [shape: f32[2,1,324], index: 0, kind: input, shape index: {}]
  %s1 = inlined_call_operand.vmem [shape: f32[8,2], index: 1, kind: input, shape index: {}]
  %s2 = inlined_call_operand.vmem [shape: f32[2,8,324], index: 2, kind: output, shape index: {}]
  %s3 = sld [smem:[#allocation0]]
  $region18: #{conv1x1_pad1_sub7.1} parent=0
    _
  %s5 = ssub.s32 1, %s3
  %s6 = scalar_select 0, %s5, %s3
  // Predicated region
  $region2: #{conv1x1_pad1_sub7.1} parent=0 // pred_check
    _
  $region3: #{conv1x1_pad1_sub7.1} parent=0 // pred_check_branch
    %8 = sbr.rel (0) target = $region5
  $region4: #{conv1x1_pad1_sub7.1} parent=0 // pred_region
    _
  $region5: #{conv1x1_pad1_sub7.1} parent=0 // pred_fallthru
    _
  // Predicated region
  $region6: #{conv1x1_pad1_sub7.1} parent=0 // pred_check
    _
  $region7: #{conv1x1_pad1_sub7.1} parent=0 // pred_check_branch
    %10 = sbr.rel (0) target = $region9
  $region8: #{conv1x1_pad1_sub7.1} parent=0 // pred_region
    _
  $region9: #{conv1x1_pad1_sub7.1} parent=0 // pred_fallthru
    _
  %v11 = vld [vmem:[%s1] sm:$0xff]
  %v12 = vld [vmem:[%s0] sm:$0x7]
  %v13 = vld [vmem:[%s0 + $0x3] sm:$0x7]
  %v16 = vlaneseq
  %v17 = vshrl.u32 %v16, 7
  %v18 = vsub.s32 0, %v17
  %v19 = vrot.slane %v12, %v18
  %v20 = vlaneseq
  %v21 = vshrl.u32 %v20, 7
  %v22 = vsub.s32 1, %v21
  %v23 = vrot.slane %v12, %v22
  %v24 = vlaneseq
  %v25 = vshrl.u32 %v24, 7
  %v26 = vsub.s32 2, %v25
  %v27 = vrot.slane %v12, %v26
  %v28 = vlaneseq
  %v29 = vshrl.u32 %v28, 7
  %v30 = vsub.s32 0, %v29
  %v31 = vrot.slane %v13, %v30
  %v32 = vlaneseq
  %v33 = vshrl.u32 %v32, 7
  %v34 = vsub.s32 1, %v33
  %v35 = vrot.slane %v13, %v34
  %v36 = vlaneseq
  %v37 = vshrl.u32 %v36, 7
  %v38 = vsub.s32 2, %v37
  %v39 = vrot.slane %v13, %v38
  %47 = vset.pattern.permute.xlu0 0
  %48 = vperm.xlu0 %47, %v11
  %v49 = vpop.permute.xlu0 %48
  %v51 = vmul.f32 %v19, %v49
  %v52 = vmul.f32 %v23, %v49
  %v53 = vmul.f32 %v27, %v49
  %v54 = vmul.f32 %v31, %v49
  %v55 = vmul.f32 %v35, %v49
  %v56 = vmul.f32 %v39, %v49
  %57 = vset.pattern.permute.xlu0 1
  %58 = vperm.xlu0 %57, %v11
  %v59 = vpop.permute.xlu0 %58
  %v61 = vadd.f32 %v51, %v59
  %v62 = vadd.f32 %v52, %v59
  %v63 = vadd.f32 %v53, %v59
  %v64 = vadd.f32 %v54, %v59
  %v65 = vadd.f32 %v55, %v59
  %v66 = vadd.f32 %v56, %v59
  %67 = vst [vmem:[%s2] sm:$0xff] %v61
  %68 = vst [vmem:[%s2 + $0x8] sm:$0xff] %v62
  %vm69 = vcmask 556032
  %70 = vst.msk [vmem:[%s2 + $0x10] sm:$0xff] %vm69, %v63
  %71 = vst [vmem:[%s2 + $0x18] sm:$0xff] %v64
  %72 = vst [vmem:[%s2 + $0x20] sm:$0xff] %v65
  %73 = vst.msk [vmem:[%s2 + $0x28] sm:$0xff] %vm69, %v66
  // Predicated region
  $region10: #{conv1x1_pad1_sub7.1} parent=0 // pred_check
    _
  $region11: #{conv1x1_pad1_sub7.1} parent=0 // pred_check_branch
    %75 = sbr.rel (0) target = $region13
  $region12: #{conv1x1_pad1_sub7.1} parent=0 // pred_region
    _
  $region13: #{conv1x1_pad1_sub7.1} parent=0 // pred_fallthru
    _
  // Predicated region
  $region14: #{conv1x1_pad1_sub7.1} parent=0 // pred_check
    _
  $region15: #{conv1x1_pad1_sub7.1} parent=0 // pred_check_branch
    %77 = sbr.rel (0) target = $region17
  $region16: #{conv1x1_pad1_sub7.1} parent=0 // pred_region
    _
  $region17: #{conv1x1_pad1_sub7.1} parent=0 // pred_fallthru
    _

</llo_original>
